<compile_context>
chip_gen: v5e
topology: v5e:2x2
jax: 0.10.0
libtpu: 0.0.40
codegen_flags: <defaults>
</compile_context>

<pallas_src>
import jax
import jax.numpy as jnp
from jax.experimental import pallas as pl
from jax.experimental.pallas import tpu as pltpu

_LANES = 128


def _length_kernel(x_ref, o_ref):
    """o = sqrt(sum_c x[:, c, ...]^2); channel axis is axis 1 of the block.

    Partial boundary blocks may contain undefined lanes; each output lane
    depends only on its own spatial position, so garbage lanes only produce
    garbage outputs that the masked boundary store discards.
    """
    C = x_ref.shape[1]
    if x_ref.ndim == 4 and C > 8:
        # Large C: f32 accumulator loop over channels keeps only ~2 slabs
        # live (instead of materializing the whole casted/squared block),
        # letting us use multi-MiB blocks without spills.  The C axis is a
        # major (non-tiled) axis, so the dynamic slice is pure address math
        # and the adds stay on the VPU.
        acc0 = jnp.zeros((x_ref.shape[0], 1) + tuple(x_ref.shape[2:]), jnp.float32)

        def body(c, acc):
            xc = x_ref[:, pl.ds(c, 1)].astype(jnp.float32)
            return acc + xc * xc

        ssq = jax.lax.fori_loop(0, C, body, acc0, unroll=min(C, 8))
    else:
        x = x_ref[...].astype(jnp.float32)            # accumulate in f32
        ssq = jnp.sum(x * x, axis=1, keepdims=True)   # C is non-minor for 4D path
    o_ref[...] = jnp.sqrt(ssq).astype(o_ref.dtype)


def _vmem_limit_bytes():
    """Generation-aware scoped-VMEM budget (v7x: 64 MiB/TC, v5e/v6e: 128 MiB)."""
    cap = None
    try:
        cap = getattr(pltpu.get_tpu_info(), "vmem_capacity_bytes", None)
    except Exception:
        cap = None
    if not cap:
        cap = 64 << 20  # conservative default = v7x per-TensorCore VMEM
    # Leave ~25% headroom for compiler scratch; clamp at 64 MiB (plenty for
    # double-buffered 8 MiB blocks, and safe on every generation).
    return int(min((cap * 3) // 4, 64 << 20))


def _round_up(x, m):
    return ((x + m - 1) // m) * m


def _check_vmem(in_vmem, out_vmem, work, vmem_limit):
    need = 2 * (in_vmem + out_vmem) + work
    if need > vmem_limit:
        raise ValueError(
            f"Requested tiling needs ~{need} bytes of VMEM (double-buffered) "
            f"but the budget is {vmem_limit}; use smaller tile_rows/tile_batch.")


def length(x, *, tile_rows=None, tile_batch=None):
    """Equivalent of torch `x.norm(dim=1, keepdim=True, p='fro')` for NCHW x."""
    B, C, H, W = x.shape
    S = H * W
    itemsize = jnp.dtype(x.dtype).itemsize
    # Native sublane tile for the dtype: 8 rows f32, 16 bf16, 32 int8/fp8.
    sub = 8 * max(1, 4 // itemsize)
    explicit = (tile_rows is not None) or (tile_batch is not None)

    vmem_limit = _vmem_limit_bytes()
    # Per-step input block budget: 4-8 MiB (review), /8 so double-buffered
    # inputs + outputs + f32 intermediates comfortably fit the limit.
    target_in = min(8 << 20, vmem_limit // 8)

    cost = pl.CostEstimate(
        flops=2 * B * C * S,              # square + accumulate per element
        transcendentals=B * S,            # sqrt per output element
        bytes_accessed=(B * C * S + B * S) * itemsize,
    )
    cparams = pltpu.CompilerParams(
        dimension_semantics=("parallel", "parallel"),   # no cross-step reduction
        vmem_limit_bytes=vmem_limit,
    )
    total_in_bytes = B * C * S * itemsize

    if S % _LANES == 0:
        # ---------------- Lane-dense aligned path ----------------
        # (B, C, H, W) -> (B, C, R, 128) is a free row-major reshape (no pad,
        # no extra HBM traffic).
        R = S // _LANES
        x_in = x.reshape(B, C, R, _LANES)

        row_bytes = C * _LANES * itemsize            # one 128-lane row across C
        if tile_rows is None:
            # Grow the spatial tile first; take the whole axis when it fits.
            max_rows = max(sub, ((target_in // row_bytes) // sub) * sub)
            tile_rows = R if R <= max_rows else max_rows
        else:
            tile_rows = min(int(tile_rows), R)
            if tile_rows < R and tile_rows % 8 != 0:
                raise ValueError(
                    "tile_rows must be a multiple of 8 when it does not cover "
                    "the full spatial axis")

        blk_in = C * tile_rows * _LANES * itemsize
        if tile_batch is None:
            tile_batch = max(1, min(B, target_in // max(1, blk_in)))
        else:
            tile_batch = max(1, min(int(tile_batch), B))

        # v7x megacore: guarantee >=2 parallel grid steps once the tensor is
        # big enough that splitting keeps blocks at a useful size.
        if (pl.cdiv(B, tile_batch) * pl.cdiv(R, tile_rows) == 1
                and total_in_bytes > (2 << 20)):
            if B >= 2:
                tile_batch = pl.cdiv(B, 2)
            elif R > 8:
                half = max(8, (pl.cdiv(R, 2) // 8) * 8)
                if half < R:
                    tile_rows = half

        grid = (pl.cdiv(B, tile_batch), pl.cdiv(R, tile_rows))
        if explicit:
            in_vmem = tile_batch * C * _round_up(tile_rows, sub) * _LANES * itemsize
            out_vmem = tile_batch * _round_up(tile_rows, sub) * _LANES * itemsize
            work = (2 * tile_batch * C * tile_rows * _LANES * 4 if C <= 8
                    else 2 * tile_batch * tile_rows * _LANES * 4)
            _check_vmem(in_vmem, out_vmem, work, vmem_limit)

        out = pl.pallas_call(
            _length_kernel,
            out_shape=jax.ShapeDtypeStruct((B, 1, R, _LANES), x.dtype),
            grid_spec=pltpu.PrefetchScalarGridSpec(
                num_scalar_prefetch=0,
                grid=grid,
                in_specs=[pl.BlockSpec((tile_batch, C, tile_rows, _LANES),
                                       lambda b, s: (b, 0, s, 0))],
                out_specs=pl.BlockSpec((tile_batch, 1, tile_rows, _LANES),
                                       lambda b, s: (b, 0, s, 0)),
            ),
            compiler_params=cparams,
            cost_estimate=cost,
        )(x_in)
        return out.reshape(B, 1, H, W)

    # ---------------- Ragged-spatial path (S % 128 != 0) ----------------
    # No host-side jnp.pad (that would add a full extra HBM round trip to a
    # bandwidth-bound op).  Tile the flat (B, C, S) layout directly with
    # 128-column spatial tiles; the partial last block reads undefined lanes,
    # whose (garbage) outputs are discarded by the masked boundary store.
    x_in = x.reshape(B, C, S)                        # free reshape
    c_pad = _round_up(C, sub)                        # sublane padding in VMEM
    n_groups = pl.cdiv(S, _LANES)

    if tile_rows is None:
        max_groups = max(1, target_in // (c_pad * _LANES * itemsize))
        tile_groups = min(n_groups, max_groups)
    else:
        tile_groups = max(1, min(int(tile_rows), n_groups))
    cols = S if tile_groups >= n_groups else tile_groups * _LANES

    blk_vmem = c_pad * _round_up(cols, _LANES) * itemsize
    if tile_batch is None:
        tile_batch = max(1, min(B, target_in // max(1, blk_vmem)))
    else:
        tile_batch = max(1, min(int(tile_batch), B))

    if (pl.cdiv(B, tile_batch) * pl.cdiv(S, cols) == 1
            and total_in_bytes > (2 << 20)):
        if B >= 2:
            tile_batch = pl.cdiv(B, 2)
        elif n_groups > 1:
            cols = pl.cdiv(n_groups, 2) * _LANES

    grid = (pl.cdiv(B, tile_batch), pl.cdiv(S, cols))
    if explicit:
        in_vmem = tile_batch * c_pad * _round_up(cols, _LANES) * itemsize
        out_vmem = tile_batch * sub * _round_up(cols, _LANES) * itemsize
        work = 2 * tile_batch * c_pad * _round_up(cols, _LANES) * 4
        _check_vmem(in_vmem, out_vmem, work, vmem_limit)

    out = pl.pallas_call(
        _length_kernel,
        out_shape=jax.ShapeDtypeStruct((B, 1, S), x.dtype),
        grid_spec=pltpu.PrefetchScalarGridSpec(
            num_scalar_prefetch=0,
            grid=grid,
            in_specs=[pl.BlockSpec((tile_batch, C, cols),
                                   lambda b, s: (b, 0, s))],
            out_specs=pl.BlockSpec((tile_batch, 1, cols),
                                   lambda b, s: (b, 0, s)),
        ),
        compiler_params=cparams,
        cost_estimate=cost,
    )(x_in)
    return out.reshape(B, 1, H, W)


def _reference(x):
    # torch.norm(dim=1, keepdim=True, p='fro') == sqrt(sum(x^2, dim=1)).
    return jnp.sqrt(
        jnp.sum(x.astype(jnp.float32) ** 2, axis=1, keepdims=True)).astype(x.dtype)


if __name__ == "__main__":
    key = jax.random.PRNGKey(0)
    keys = jax.random.split(key, 7)

    # Primary capsule-style input: NCHW (batch=2, channels=4, spatial=16x16).
    x = jax.random.normal(keys[0], (2, 4, 16, 16), dtype=jnp.float32)
    out = jax.block_until_ready(length(x))
    assert out.shape == (2, 1, 16, 16), out.shape
    assert jnp.allclose(out, _reference(x), atol=1e-5, rtol=1e-5)

    # Ragged spatial size (H*W % 128 != 0) -> pad-free 3D path.
    x2 = jax.random.normal(keys[1], (3, 5, 9, 13), dtype=jnp.float32)
    out2 = jax.block_until_ready(length(x2))
    assert out2.shape == (3, 1, 9, 13)
    assert jnp.allclose(out2, _reference(x2), atol=1e-5, rtol=1e-5)

    # Aligned path with explicit spatial tiling (multi-step grid + partial last block).
    x3 = jax.random.normal(keys[2], (2, 3, 48, 48), dtype=jnp.float32)
    out3 = jax.block_until_ready(length(x3, tile_rows=8))
    assert out3.shape == (2, 1, 48, 48)
    assert jnp.allclose(out3, _reference(x3), atol=1e-5, rtol=1e-5)

    # Ragged path with explicit 128-column tiling (partial last spatial block).
    x4 = jax.random.normal(keys[3], (2, 4, 20, 20), dtype=jnp.float32)
    out4 = jax.block_until_ready(length(x4, tile_rows=1))
    assert out4.shape == (2, 1, 20, 20)
    assert jnp.allclose(out4, _reference(x4), atol=1e-5, rtol=1e-5)

    # Larger channel count -> in-kernel f32 accumulator loop over channels.
    x5 = jax.random.normal(keys[4], (1, 12, 64, 64), dtype=jnp.float32)
    out5 = jax.block_until_ready(length(x5))
    assert out5.shape == (1, 1, 64, 64)
    assert jnp.allclose(out5, _reference(x5), atol=1e-5, rtol=1e-5)

    # Mid-size input -> exercises the >=2-parallel-steps (megacore) sizing path.
    x6 = jax.random.normal(keys[5], (2, 8, 192, 192), dtype=jnp.float32)
    out6 = jax.block_until_ready(length(x6))
    assert out6.shape == (2, 1, 192, 192)
    assert jnp.allclose(out6, _reference(x6), atol=1e-5, rtol=1e-5)

    # bf16 input (narrow-dtype load/cast/store path).
    x7 = jax.random.normal(keys[6], (2, 4, 32, 32)).astype(jnp.bfloat16)
    out7 = jax.block_until_ready(length(x7))
    assert out7.shape == (2, 1, 32, 32)
    assert jnp.allclose(out7.astype(jnp.float32),
                        _reference(x7).astype(jnp.float32),
                        atol=2e-2, rtol=2e-2)

    print("KERNEL_OK")
</pallas_src>

<mosaic_0001>
module attributes {stable_mosaic.version = 11 : i64} {
  func.func @_length_kernel(%arg0: i32, %arg1: i32, %arg2: memref<2x4x2x128xf32, #tpu.memory_space<vmem>>, %arg3: memref<2x1x2x128xf32, #tpu.memory_space<vmem>>) attributes {dimension_semantics = [#tpu.dimension_semantics<parallel>, #tpu.dimension_semantics<parallel>], iteration_bounds = array<i64: 1, 1>, scalar_prefetch = 0 : i64, scratch_operands = 0 : i64, tpu.core_type = #tpu.core_type<tc>, window_params = [{transform_indices = @transform_0, window_bounds = array<i64: 2, 4, 2, 128>}, {transform_indices = @transform_1, window_bounds = array<i64: 2, 1, 2, 128>}]} {
    %c0 = arith.constant 0 : index
    %c0_0 = arith.constant 0 : index
    %c0_1 = arith.constant 0 : index
    %c0_2 = arith.constant 0 : index
    %0 = vector.load %arg2[%c0, %c0_0, %c0_1, %c0_2] : memref<2x4x2x128xf32, #tpu.memory_space<vmem>>, vector<2x4x2x128xf32>
    %1 = arith.mulf %0, %0 : vector<2x4x2x128xf32>
    %cst = arith.constant dense<0.000000e+00> : vector<2x2x128xf32>
    %2 = vector.multi_reduction <add>, %1, %cst [1] : vector<2x4x2x128xf32> to vector<2x2x128xf32>
    %3 = vector.shape_cast %2 : vector<2x2x128xf32> to vector<2x1x2x128xf32>
    %4 = math.sqrt %3 : vector<2x1x2x128xf32>
    %c0_3 = arith.constant 0 : index
    %c0_4 = arith.constant 0 : index
    %c0_5 = arith.constant 0 : index
    %c0_6 = arith.constant 0 : index
    %5 = vector.load %arg3[%c0_3, %c0_4, %c0_5, %c0_6] : memref<2x1x2x128xf32, #tpu.memory_space<vmem>>, vector<2x1x2x128xf32>
    tpu.vector_store %arg3[%c0_3, %c0_4, %c0_5, %c0_6], %4 {strides = array<i32>} : memref<2x1x2x128xf32, #tpu.memory_space<vmem>>, vector<2x1x2x128xf32>,
    return
  }
  func.func @transform_0(%arg0: i32, %arg1: i32) -> (i32, i32, i32, i32) {
    %c0_i32 = arith.constant 0 : i32
    %c0_i32_0 = arith.constant 0 : i32
    %c0_i32_1 = arith.constant 0 : i32
    return %arg0, %c0_i32, %arg1, %c0_i32_0 : i32, i32, i32, i32
  }
  func.func @transform_1(%arg0: i32, %arg1: i32) -> (i32, i32, i32, i32) {
    %c0_i32 = arith.constant 0 : i32
    %c0_i32_0 = arith.constant 0 : i32
    %c0_i32_1 = arith.constant 0 : i32
    return %arg0, %c0_i32, %arg1, %c0_i32_0 : i32, i32, i32, i32
  }
}

</mosaic_0001>

<llo_original>
// kernel: tpu_custom_call.1
$region0: #{tpu_custom_call.1}
  #allocation0 [shape = 'u32[]', space=smem, size = 0x4, offset = 0x4, fixed_abs, tag = 'smem constant byte address 0x4 - core index']
  #allocation1 [shape = 'u32[72,128]{1,0:T(1,128)}', space=vmem, size = 0x9000, scoped, tag = 'internal scratch']
  %s0 = inlined_call_operand.hbm [shape: f32[2,4,2,128], index: 0, kind: input, shape index: {}]
  %s1 = inlined_call_operand.hbm [shape: f32[2,1,2,128], index: 1, kind: output, shape index: {}]
  %s2 = sld [smem:[#allocation0]]
  $region18: #{tpu_custom_call.1} parent=0
    _
  %s4 = ssub.s32 1, %s2
  %s5 = scalar_select 0, %s4, %s2
  $region1: #{tpu_custom_call.1} parent=0
    #allocation2 [shape = 'u8[8192]{0}', space=vmem, size = 0x2000, scoped, tag = 'input window, operand 0, single buffered']
    #allocation3 [shape = 's32[1]{0}', space=sflag, size = 0x4, scoped, tag = 'scoped memory for tpu_custom_call.1']
    #allocation4 [shape = 's32[1]{0}', space=sflag, size = 0x4, scoped, tag = 'scoped memory for tpu_custom_call.1']
    #allocation5 [shape = 'u8[2048]{0}', space=vmem, size = 0x800, scoped, tag = 'output window, operand 0, single buffered']
    %6 = vsyncpa [#allocation3], 0
    %7 = vsyncpa [#allocation4], 0
    // Predicated region
    $region2: #{tpu_custom_call.1} parent=1 // pred_check
      _
    $region3: #{tpu_custom_call.1} parent=1 // pred_check_branch
      %9 = sbr.rel (0) target = $region5
    $region4: #{tpu_custom_call.1} parent=1 // pred_region
      %11 = vsyncadd [#allocation3], 0
      %s12 = sshll.u32 %s0, 4
      %s13 = int_to_ptr.hbm [resolvable:$true] %s12
      %s14 = sshll.u32 [#allocation2], 4
      %s15 = int_to_ptr.vmem [resolvable:$true] %s14
      %20 = dma.hbm_to_vmem [thread:$0]  %s13, 256, %s15, [#allocation3], 32, 32, 2
    $region5: #{tpu_custom_call.1} parent=1 // pred_fallthru
      _
    // Predicated region
    $region6: #{tpu_custom_call.1} parent=1 // pred_check
      _
    $region7: #{tpu_custom_call.1} parent=1 // pred_check_branch
      %22 = sbr.rel (0) target = $region9
    $region8: #{tpu_custom_call.1} parent=1 // pred_region
      %24 = dma.done [#allocation3], 256
    $region9: #{tpu_custom_call.1} parent=1 // pred_fallthru
      _
    %v25 = vld [vmem:[#allocation2] sm:$0x3]
    %v26 = vld [vmem:[#allocation2 + $0x2] sm:$0x3]
    %v27 = vld [vmem:[#allocation2 + $0x4] sm:$0x3]
    %v28 = vld [vmem:[#allocation2 + $0x6] sm:$0x3]
    %v29 = vld [vmem:[#allocation2 + $0x8] sm:$0x3]
    %v30 = vld [vmem:[#allocation2 + $0xa] sm:$0x3]
    %v31 = vld [vmem:[#allocation2 + $0xc] sm:$0x3]
    %v32 = vld [vmem:[#allocation2 + $0xe] sm:$0x3]
    %v33 = vmul.f32 %v25, %v25
    %v34 = vmul.f32 %v26, %v26
    %v35 = vmul.f32 %v27, %v27
    %v36 = vmul.f32 %v28, %v28
    %v37 = vmul.f32 %v29, %v29
    %v38 = vmul.f32 %v30, %v30
    %v39 = vmul.f32 %v31, %v31
    %v40 = vmul.f32 %v32, %v32
    %vm41 = vcmask 1041408
    %v42 = vsel %vm41, %v33, 0.0
    %v43 = vsel %vm41, %v34, 0.0
    %v44 = vadd.f32 %v42, %v43
    %v45 = vsel %vm41, %v35, 0.0
    %v46 = vadd.f32 %v44, %v45
    %v47 = vsel %vm41, %v36, 0.0
    %v48 = vadd.f32 %v46, %v47
    %v49 = vsel %vm41, %v37, 0.0
    %v50 = vsel %vm41, %v38, 0.0
    %v51 = vadd.f32 %v49, %v50
    %v52 = vsel %vm41, %v39, 0.0
    %v53 = vadd.f32 %v51, %v52
    %v54 = vsel %vm41, %v40, 0.0
    %v55 = vadd.f32 %v53, %v54
    %v56 = vrsqrt.pop %v48
    %v57 = vmul.f32 %v56, %v48
    %v58 = vmul.f32 %v57, %v56
    %v59 = vmul.f32 0.5, %v58
    %v60 = vsub.f32 1.5, %v59
    %v61 = vmul.f32 %v56, %v60
    %v62 = vmul.f32 %v48, %v61
    %vm63 = vcmp.eq.f32.partialorder %v48, inf
    %v64 = vsel %vm63, %v48, %v62
    %vm65 = vcmp.eq.f32.partialorder %v48, 0.0
    %v66 = vand.u32 %v48, 2147483648
    %v67 = vsel %vm65, %v66, %v64
    %v68 = vrsqrt.pop %v55
    %v69 = vmul.f32 %v68, %v55
    %v70 = vmul.f32 %v69, %v68
    %v71 = vmul.f32 0.5, %v70
    %v72 = vsub.f32 1.5, %v71
    %v73 = vmul.f32 %v68, %v72
    %v74 = vmul.f32 %v55, %v73
    %vm75 = vcmp.eq.f32.partialorder %v55, inf
    %v76 = vsel %vm75, %v55, %v74
    %vm77 = vcmp.eq.f32.partialorder %v55, 0.0
    %v78 = vand.u32 %v55, 2147483648
    %v79 = vsel %vm77, %v78, %v76
    %80 = vst [vmem:[#allocation5] sm:$0x3] %v67
    %81 = vst [vmem:[#allocation5 + $0x2] sm:$0x3] %v79
    // Predicated region
    $region10: #{tpu_custom_call.1} parent=1 // pred_check
      _
    $region11: #{tpu_custom_call.1} parent=1 // pred_check_branch
      %83 = sbr.rel (0) target = $region13
    $region12: #{tpu_custom_call.1} parent=1 // pred_region
      %85 = vsyncadd [#allocation4], 0
      %s86 = sshll.u32 [#allocation5], 4
      %s87 = int_to_ptr.vmem [resolvable:$true] %s86
      %s88 = sshll.u32 %s1, 4
      %s89 = int_to_ptr.hbm [resolvable:$true] %s88
      %94 = dma.vmem_to_hbm [thread:$0]  %s87, 64, %s89, [#allocation4], 32, 32, 2
    $region13: #{tpu_custom_call.1} parent=1 // pred_fallthru
      _
    // Predicated region
    $region14: #{tpu_custom_call.1} parent=1 // pred_check
      _
    $region15: #{tpu_custom_call.1} parent=1 // pred_check_branch
      %96 = sbr.rel (0) target = $region17
    $region16: #{tpu_custom_call.1} parent=1 // pred_region
      %98 = dma.done [#allocation4], 64
    $region17: #{tpu_custom_call.1} parent=1 // pred_fallthru
      _
    %99 = vsyncpa [#allocation3], 1
    %100 = vsyncpa [#allocation4], 1

</llo_original>
